<compile_context>
chip_gen: v7x
topology: tpu7x:2x2x1
jax: 0.10.0
libtpu: 0.0.40
codegen_flags: <defaults>
</compile_context>

<pallas_src>
import jax
import jax.numpy as jnp
from jax.experimental import pallas as pl
from jax.experimental.pallas import tpu as pltpu


def _temporal_cutoff_kernel(x_ref, w_ref, b_ref, lags_ref, o_ref):
    x = x_ref[...]            # (Bt, Nt, L)
    w = w_ref[...]            # (Nt, L)
    bias = b_ref[...]         # (Nt, 1)
    lags = lags_ref[...]      # (1, L)

    # Per-variate Linear(L -> 1): elementwise mul + reduce over the lane axis.
    # Accumulate in f32 regardless of input dtype (PyTorch Linear is f32).
    xw = x.astype(jnp.float32) * w.astype(jnp.float32)[None, :, :]
    cutoff = (jnp.sum(xw, axis=-1, keepdims=True)
              + bias.astype(jnp.float32)[None, :, :])              # (Bt, Nt, 1)

    # look_ahead_params = cutoff * lags + 1
    look_ahead = cutoff * lags.astype(jnp.float32)[None, :, :] + 1.0  # (Bt, Nt, L)

    # (look_ahead_plus_ind - look_ahead) == indicator in the forward pass,
    # i.e. out = x * (look_ahead > 0).  Use a single select instead of
    # cast + multiply; no extra (Bt, Nt, L) indicator temporary is kept live.
    o_ref[...] = jnp.where(look_ahead > 0, x, jnp.zeros_like(x))


def _divisor_tile(dim, limit, multiple=1):
    """Largest divisor of `dim` that is <= limit and a multiple of `multiple`.
    Falls back to the full extent (always a legal block size)."""
    if dim <= limit:
        return dim
    for t in range(int(limit), 0, -1):
        if dim % t == 0 and t % multiple == 0:
            return t
    return dim


def temporal_cutoff_forward(x, weight, bias, lags, *, block_b=None, block_n=None):
    """x: (B, N, L); weight: (N, L); bias: (N, 1); lags: (1, L)."""
    B, N, L = x.shape
    itemsize = jnp.dtype(x.dtype).itemsize

    # Tile sizing: ~4 MiB x-tile target so the double-buffered footprint
    # (2 bufs x (x tile + out tile) + weight tile) amortizes the ~0.35 us
    # per-grid-step overhead while staying well inside v7x's 64 MiB VMEM.
    tile_bytes_target = 4 * 1024 * 1024
    rows_target = max(1, tile_bytes_target // max(1, L * itemsize))

    if block_n is None:
        # Second-to-last block dim: must be a multiple of 8 or the full extent.
        block_n = _divisor_tile(N, max(8, min(N, rows_target)), multiple=8)
    if block_b is None:
        block_b = _divisor_tile(B, max(1, min(B, rows_target // block_n)), multiple=1)

    assert N % block_n == 0 and B % block_b == 0, "tile sizes must divide B and N"

    grid = (N // block_n, B // block_b)  # N-tiles slowest -> weight DMA reused across B.

    # NOTE: L is kept as the full last (lane) dim of every block; for very
    # small L the stores are masked, but for realistic seq_len (>=128) they
    # are lane-dense unmasked vst's.
    x_spec = pl.BlockSpec((block_b, block_n, L), lambda n, b: (b, n, 0))
    w_spec = pl.BlockSpec((block_n, L), lambda n, b: (n, 0))
    b_spec = pl.BlockSpec((block_n, 1), lambda n, b: (n, 0))
    lags_spec = pl.BlockSpec((1, L), lambda n, b: (0, 0))
    out_spec = pl.BlockSpec((block_b, block_n, L), lambda n, b: (b, n, 0))

    return pl.pallas_call(
        _temporal_cutoff_kernel,
        out_shape=jax.ShapeDtypeStruct((B, N, L), x.dtype),
        grid=grid,
        in_specs=[x_spec, w_spec, b_spec, lags_spec],
        out_specs=out_spec,
        compiler_params=pltpu.CompilerParams(
            dimension_semantics=("parallel", "parallel"),
            vmem_limit_bytes=48 * 1024 * 1024,
        ),
    )(x, weight, bias, lags)


def reference_forward(x, weight, bias, lags):
    """Pure-JAX reference mirroring the PyTorch module."""
    cutoff = (jnp.sum(x.astype(jnp.float32) * weight[None, :, :].astype(jnp.float32),
                      axis=-1, keepdims=True)
              + bias[None, :, :].astype(jnp.float32))
    look_ahead = cutoff * lags[None, :, :].astype(jnp.float32) + 1.0
    indicator = (look_ahead > 0).astype(x.dtype)
    return x * indicator


if __name__ == "__main__":
    # Small shapes that still exercise a real (2, 2) grid and lane-dense L.
    B, N, L = 4, 16, 128  # batch, num_input_variates, seq_len

    key = jax.random.PRNGKey(0)
    kx, kw, kb = jax.random.split(key, 3)

    x = jax.random.normal(kx, (B, N, L), dtype=jnp.float32)

    # N stacked Linear(L, 1) layers: weights stacked to (N, L), biases to (N, 1).
    bound = 1.0 / jnp.sqrt(L)
    weight = jax.random.uniform(kw, (N, L), dtype=jnp.float32, minval=-bound, maxval=bound)
    bias = jax.random.uniform(kb, (N, 1), dtype=jnp.float32, minval=-bound, maxval=bound)

    # lags = arange(L) - L  (kept 2-D so the lag axis stays on lanes)
    lags = (jnp.arange(L, dtype=jnp.float32) - float(L)).reshape(1, L)

    out = temporal_cutoff_forward(x, weight, bias, lags, block_b=2, block_n=8)
    out = jax.block_until_ready(out)

    ref = reference_forward(x, weight, bias, lags)
    assert out.shape == (B, N, L)
    assert jnp.allclose(out, ref, atol=1e-5, rtol=1e-5), "mismatch vs reference"

    print("KERNEL_OK")
</pallas_src>

<mosaic_0001>
module attributes {stable_mosaic.version = 11 : i64} {
  func.func @_temporal_cutoff_kernel(%arg0: i32, %arg1: i32, %arg2: memref<2x8x128xf32, #tpu.memory_space<vmem>>, %arg3: memref<8x128xf32, #tpu.memory_space<vmem>>, %arg4: memref<8x1xf32, #tpu.memory_space<vmem>>, %arg5: memref<1x128xf32, #tpu.memory_space<vmem>>, %arg6: memref<2x8x128xf32, #tpu.memory_space<vmem>>) attributes {dimension_semantics = [#tpu.dimension_semantics<parallel>, #tpu.dimension_semantics<parallel>], iteration_bounds = array<i64: 2, 2>, scalar_prefetch = 0 : i64, scratch_operands = 0 : i64, tpu.core_type = #tpu.core_type<tc>, window_params = [{transform_indices = @transform_0, window_bounds = array<i64: 2, 8, 128>}, {transform_indices = @transform_1, window_bounds = array<i64: 8, 128>}, {transform_indices = @transform_2, window_bounds = array<i64: 8, 1>}, {pipeline_mode = #tpu.pipeline_mode<synchronous>, transform_indices = @transform_3, window_bounds = array<i64: 1, 128>}, {transform_indices = @transform_4, window_bounds = array<i64: 2, 8, 128>}]} {
    %c0 = arith.constant 0 : index
    %c0_0 = arith.constant 0 : index
    %c0_1 = arith.constant 0 : index
    %0 = vector.load %arg2[%c0, %c0_0, %c0_1] : memref<2x8x128xf32, #tpu.memory_space<vmem>>, vector<2x8x128xf32>
    %c0_2 = arith.constant 0 : index
    %c0_3 = arith.constant 0 : index
    %1 = vector.load %arg3[%c0_2, %c0_3] : memref<8x128xf32, #tpu.memory_space<vmem>>, vector<8x128xf32>
    %c0_4 = arith.constant 0 : index
    %c0_5 = arith.constant 0 : index
    %2 = vector.load %arg4[%c0_4, %c0_5] : memref<8x1xf32, #tpu.memory_space<vmem>>, vector<8x1xf32>
    %c0_6 = arith.constant 0 : index
    %c0_7 = arith.constant 0 : index
    %3 = vector.load %arg5[%c0_6, %c0_7] : memref<1x128xf32, #tpu.memory_space<vmem>>, vector<1x128xf32>
    %4 = vector.shape_cast %1 : vector<8x128xf32> to vector<1x8x128xf32>
    %5 = vector.broadcast %4 : vector<1x8x128xf32> to vector<2x8x128xf32>
    %6 = arith.mulf %0, %5 : vector<2x8x128xf32>
    %cst = arith.constant dense<0.000000e+00> : vector<2x8xf32>
    %7 = vector.multi_reduction <add>, %6, %cst [2] : vector<2x8x128xf32> to vector<2x8xf32>
    %8 = vector.shape_cast %7 : vector<2x8xf32> to vector<2x8x1xf32>
    %9 = vector.shape_cast %2 : vector<8x1xf32> to vector<1x8x1xf32>
    %10 = vector.broadcast %9 : vector<1x8x1xf32> to vector<2x8x1xf32>
    %11 = arith.addf %8, %10 : vector<2x8x1xf32>
    %12 = vector.shape_cast %3 : vector<1x128xf32> to vector<1x1x128xf32>
    %13 = vector.broadcast %11 : vector<2x8x1xf32> to vector<2x8x128xf32>
    %14 = vector.broadcast %12 : vector<1x1x128xf32> to vector<2x8x128xf32>
    %15 = arith.mulf %13, %14 : vector<2x8x128xf32>
    %cst_8 = arith.constant 1.000000e+00 : f32
    %16 = vector.broadcast %cst_8 : f32 to vector<2x8x128xf32>
    %17 = arith.addf %15, %16 : vector<2x8x128xf32>
    %cst_9 = arith.constant 0.000000e+00 : f32
    %18 = vector.broadcast %cst_9 : f32 to vector<2x8x128xf32>
    %19 = arith.cmpf ogt, %17, %18 : vector<2x8x128xf32>
    %cst_10 = arith.constant 0.000000e+00 : f32
    %20 = vector.broadcast %cst_10 : f32 to vector<2x8x128xf32>
    %21 = arith.select %19, %0, %20 : vector<2x8x128xi1>, vector<2x8x128xf32>
    %c0_11 = arith.constant 0 : index
    %c0_12 = arith.constant 0 : index
    %c0_13 = arith.constant 0 : index
    %22 = vector.load %arg6[%c0_11, %c0_12, %c0_13] : memref<2x8x128xf32, #tpu.memory_space<vmem>>, vector<2x8x128xf32>
    tpu.vector_store %arg6[%c0_11, %c0_12, %c0_13], %21 {strides = array<i32>} : memref<2x8x128xf32, #tpu.memory_space<vmem>>, vector<2x8x128xf32>,
    return
  }
  func.func @transform_0(%arg0: i32, %arg1: i32) -> (i32, i32, i32) {
    %c0_i32 = arith.constant 0 : i32
    %c0_i32_0 = arith.constant 0 : i32
    return %arg1, %arg0, %c0_i32 : i32, i32, i32
  }
  func.func @transform_1(%arg0: i32, %arg1: i32) -> (i32, i32) {
    %c0_i32 = arith.constant 0 : i32
    %c0_i32_0 = arith.constant 0 : i32
    return %arg0, %c0_i32 : i32, i32
  }
  func.func @transform_2(%arg0: i32, %arg1: i32) -> (i32, i32) {
    %c0_i32 = arith.constant 0 : i32
    %c0_i32_0 = arith.constant 0 : i32
    return %arg0, %c0_i32 : i32, i32
  }
  func.func @transform_3(%arg0: i32, %arg1: i32) -> (i32, i32) {
    %c0_i32 = arith.constant 0 : i32
    %c0_i32_0 = arith.constant 0 : i32
    %c0_i32_1 = arith.constant 0 : i32
    return %c0_i32, %c0_i32_0 : i32, i32
  }
  func.func @transform_4(%arg0: i32, %arg1: i32) -> (i32, i32, i32) {
    %c0_i32 = arith.constant 0 : i32
    %c0_i32_0 = arith.constant 0 : i32
    return %arg1, %arg0, %c0_i32 : i32, i32, i32
  }
}

</mosaic_0001>

<llo_original>
// kernel: tpu_custom_call.1
$region0: #{tpu_custom_call.1}
  #allocation0 [shape = 'u32[]', space=smem, size = 0x4, offset = 0x4, fixed_abs, tag = 'smem constant byte address 0x4 - core index']
  #allocation1 [shape = 'u32[144,128]{1,0:T(1,128)}', space=vmem, size = 0x12000, scoped, tag = 'internal scratch']
  %s0 = inlined_call_operand.hbm [shape: f32[4,16,128], index: 0, kind: input, shape index: {}]
  %s1 = inlined_call_operand.vmem [shape: f32[16,128], index: 1, kind: input, shape index: {}]
  %s2 = inlined_call_operand.vmem [shape: f32[16,1], index: 2, kind: input, shape index: {}]
  %s3 = inlined_call_operand.vmem [shape: f32[1,128], index: 3, kind: input, shape index: {}]
  %s4 = inlined_call_operand.hbm [shape: f32[4,16,128], index: 4, kind: output, shape index: {}]
  %s5 = sld [smem:[#allocation0]]
  $region53: #{tpu_custom_call.1} parent=0
    _
  %s7 = ssub.s32 1, %s5
  %s8 = scalar_select 0, %s7, %s5
  $region1: #{tpu_custom_call.1} parent=0
    #allocation2 [shape = 'u8[16384]{0}', space=vmem, size = 0x4000, scoped, tag = 'input window, operand 0']
    #allocation3 [shape = 's32[2]{0}', space=sflag, size = 0x8, scoped, tag = 'scoped memory for tpu_custom_call.1']
    #allocation4 [shape = 's32[2]{0}', space=sflag, size = 0x8, scoped, tag = 'scoped memory for tpu_custom_call.1']
    #allocation5 [shape = 'u8[16384]{0}', space=vmem, size = 0x4000, scoped, tag = 'output window, operand 0']
    %9 = vsyncpa [#allocation3], 0
    %s10 = scalar_lea.sflag [#allocation3], 1
    %11 = vsyncpa %s10, 0
    %12 = vsyncpa [#allocation4], 0
    %s13 = scalar_lea.sflag [#allocation4], 1
    %14 = vsyncpa %s13, 0
    loop: start=0, step=1, limit=6
    $region2: #{tpu_custom_call.1} parent=1 // loop_pre_header
      _
    $region3: #{tpu_custom_call.1} parent=1 // loop_header
      %s16 = sphi 0, %s20
      %p17 = scmp.ge.s32.totalorder %s16, 6
      %s23 = sphi 0, %s35
      %s24 = sphi 0, %s31
      %s25 = sphi 0, %s23
      %s26 = sphi 0, %s24
      %s27 = sphi 0, %s25
      %s28 = sphi 0, %s26
      %s40 = sphi 0, %s42
      %s43 = sphi 0, %s40
      %s44 = sphi 0, %s43
      %s60 = sphi 0, %s44
      %s66 = sphi 0, %s68
      %s69 = sphi 0, %s66
      %s70 = sphi 0, %s69
      %s86 = sphi 0, %s70
      %s92 = sphi 0, %s94
      %s95 = sphi 0, %s92
      %s96 = sphi 0, %s95
      %s112 = sphi 0, %s96
      %s116 = sphi 0, %s116
      %s118 = sphi 0, %s116
      %s119 = sphi 0, %s118
      %s133 = sphi 0, %s119
      %s141 = sphi 0, %s143
      %s144 = sphi 0, %s141
      %s145 = sphi 0, %s144
      %s161 = sphi 0, %s145
    $region4: #{tpu_custom_call.1} parent=1 // loop_header_branch
      %19 = sbr.rel (%p17) target = $region8
    $region5: #{tpu_custom_call.1} parent=1 // loop_body
      %s21 = ssub.s32 %s16, 1
      %s22 = ssub.s32 %s16, 2
      %s29 = sadd.s32 1, %s24
      %p30 = scmp.ge.s32.totalorder %s29, 2
      %s31 = scalar_select %p30, 0, %s29
      %s32 = sadd.s32 1, %s23
      %s33 = scalar_select %p30, %s32, %s23
      %p34 = scmp.ge.s32.totalorder %s33, 2
      %s35 = scalar_select %p34, 0, %s33
      %s36 = ssub.s32 %s24, %s31
      %s37 = ssub.s32 %s23, %s35
      %s38 = sor.u32 %s36, %s37
      %p39 = scmp.eq.s32.totalorder %s38, 0
      %s41 = sadd.s32 %s40, 1
      %s42 = scalar_select %p39, %s40, %s41
      %p45 = pneg %p39
      %p46 = scmp.eq.s32.totalorder %s16, 3
      %p47 = por %p45, %p46
      %p48 = scmp.ne.s32.totalorder %s40, %s43
      %p49 = scmp.eq.s32.totalorder %s16, 0
      %p50 = por %p48, %p49
      %p51 = scmp.ne.s32.totalorder %s40, %s43
      %p52 = scmp.eq.s32.totalorder %s21, 3
      %p53 = por %p51, %p52
      %p54 = scmp.ne.s32.totalorder %s43, %s44
      %p55 = scmp.eq.s32.totalorder %s21, 0
      %p56 = por %p54, %p55
      %p57 = scmp.ne.s32.totalorder %s43, %s44
      %p58 = scmp.eq.s32.totalorder %s22, 3
      %p59 = por %p57, %p58
      %p61 = scmp.ne.s32.totalorder %s44, %s60
      %p62 = scmp.eq.s32.totalorder %s22, 0
      %p63 = por %p61, %p62
      %s64 = ssub.s32 %s23, %s35
      %p65 = scmp.eq.s32.totalorder %s64, 0
      %s67 = sadd.s32 %s66, 1
      %s68 = scalar_select %p65, %s66, %s67
      %p71 = pneg %p65
      %p72 = scmp.eq.s32.totalorder %s16, 3
      %p73 = por %p71, %p72
      %p74 = scmp.ne.s32.totalorder %s66, %s69
      %p75 = scmp.eq.s32.totalorder %s16, 0
      %p76 = por %p74, %p75
      %p77 = scmp.ne.s32.totalorder %s66, %s69
      %p78 = scmp.eq.s32.totalorder %s21, 3
      %p79 = por %p77, %p78
      %p80 = scmp.ne.s32.totalorder %s69, %s70
      %p81 = scmp.eq.s32.totalorder %s21, 0
      %p82 = por %p80, %p81
      %p83 = scmp.ne.s32.totalorder %s69, %s70
      %p84 = scmp.eq.s32.totalorder %s22, 3
      %p85 = por %p83, %p84
      %p87 = scmp.ne.s32.totalorder %s70, %s86
      %p88 = scmp.eq.s32.totalorder %s22, 0
      %p89 = por %p87, %p88
      %s90 = ssub.s32 %s23, %s35
      %p91 = scmp.eq.s32.totalorder %s90, 0
      %s93 = sadd.s32 %s92, 1
      %s94 = scalar_select %p91, %s92, %s93
      %p97 = pneg %p91
      %p98 = scmp.eq.s32.totalorder %s16, 3
      %p99 = por %p97, %p98
      %p100 = scmp.ne.s32.totalorder %s92, %s95
      %p101 = scmp.eq.s32.totalorder %s16, 0
      %p102 = por %p100, %p101
      %p103 = scmp.ne.s32.totalorder %s92, %s95
      %p104 = scmp.eq.s32.totalorder %s21, 3
      %p105 = por %p103, %p104
      %p106 = scmp.ne.s32.totalorder %s95, %s96
      %p107 = scmp.eq.s32.totalorder %s21, 0
      %p108 = por %p106, %p107
      %p109 = scmp.ne.s32.totalorder %s95, %s96
      %p110 = scmp.eq.s32.totalorder %s22, 3
      %p111 = por %p109, %p110
      %p113 = scmp.ne.s32.totalorder %s96, %s112
      %p114 = scmp.eq.s32.totalorder %s22, 0
      %p115 = por %p113, %p114
      %s117 = sadd.s32 %s116, 1
      %p120 = scmp.eq.s32.totalorder %s16, 3
      %p121 = scmp.ne.s32.totalorder %s116, %s118
      %p122 = scmp.eq.s32.totalorder %s16, 0
      %p123 = por %p121, %p122
      %p124 = scmp.ne.s32.totalorder %s116, %s118
      %p125 = scmp.eq.s32.totalorder %s21, 3
      %p126 = por %p124, %p125
      %p127 = scmp.ne.s32.totalorder %s118, %s119
      %p128 = scmp.eq.s32.totalorder %s21, 0
      %p129 = por %p127, %p128
      %p130 = scmp.ne.s32.totalorder %s118, %s119
      %p131 = scmp.eq.s32.totalorder %s22, 3
      %p132 = por %p130, %p131
      %p134 = scmp.ne.s32.totalorder %s119, %s133
      %p135 = scmp.eq.s32.totalorder %s22, 0
      %p136 = por %p134, %p135
      %s137 = ssub.s32 %s24, %s31
      %s138 = ssub.s32 %s23, %s35
      %s139 = sor.u32 %s137, %s138
      %p140 = scmp.eq.s32.totalorder %s139, 0
      %s142 = sadd.s32 %s141, 1
      %s143 = scalar_select %p140, %s141, %s142
      %p146 = pneg %p140
      %p147 = scmp.eq.s32.totalorder %s16, 3
      %p148 = por %p146, %p147
      %p149 = scmp.ne.s32.totalorder %s141, %s144
      %p150 = scmp.eq.s32.totalorder %s16, 0
      %p151 = por %p149, %p150
      %p152 = scmp.ne.s32.totalorder %s141, %s144
      %p153 = scmp.eq.s32.totalorder %s21, 3
      %p154 = por %p152, %p153
      %p155 = scmp.ne.s32.totalorder %s144, %s145
      %p156 = scmp.eq.s32.totalorder %s21, 0
      %p157 = por %p155, %p156
      %p158 = scmp.ne.s32.totalorder %s144, %s145
      %p159 = scmp.eq.s32.totalorder %s22, 3
      %p160 = por %p158, %p159
      %p162 = scmp.ne.s32.totalorder %s145, %s161
      %p163 = scmp.eq.s32.totalorder %s22, 0
      %p164 = por %p162, %p163
      %p165 = scmp.le.s32.totalorder 1, %s16
      %p166 = scmp.lt.s32.totalorder %s16, 5
      %p167 = pnand %p165, %p166
      %p168 = pneg %p167
      // Predicated region
      $region9: #{tpu_custom_call.1} parent=5 // pred_check
        _
      $region10: #{tpu_custom_call.1} parent=5 // pred_check_branch
        %170 = sbr.rel (%p167) target = $region12
      $region11: #{tpu_custom_call.1} parent=5 // pred_region
        %s171 = ssub.s32 %s16, 1
        // Predicated region
        $region13: #{tpu_custom_call.1} parent=11 // pred_check
          %p172 = pneg %p129
        $region14: #{tpu_custom_call.1} parent=11 // pred_check_branch
          %174 = sbr.rel (%p172) target = $region16
        $region15: #{tpu_custom_call.1} parent=11 // pred_region
          _
        $region16: #{tpu_custom_call.1} parent=11 // pred_fallthru
          _
      $region12: #{tpu_custom_call.1} parent=5 // pred_fallthru
        _
      %p175 = scmp.lt.s32.totalorder %s16, 4
      // Predicated region
      $region17: #{tpu_custom_call.1} parent=5 // pred_check
        %p176 = pneg %p175
      $region18: #{tpu_custom_call.1} parent=5 // pred_check_branch
        %178 = sbr.rel (%p176) target = $region20
      $region19: #{tpu_custom_call.1} parent=5 // pred_region
        // Predicated region
        $region21: #{tpu_custom_call.1} parent=19 // pred_check
          %p179 = pneg %p50
        $region22: #{tpu_custom_call.1} parent=19 // pred_check_branch
          %181 = sbr.rel (%p179) target = $region24
        $region23: #{tpu_custom_call.1} parent=19 // pred_region
          %s182 = sand.u32 %s40, 1
          %s183 = scalar_lea.sflag [#allocation3], %s182
          %s184 = sand.u32 %s40, 1
          %s185 = smul.addr %s184, 16
          %s186 = scalar_lea.vmem [#allocation2], %s185
          %s187 = smul.u32 2, %s24
          %s189 = ssub.s32 256, 256
          %190 = vsyncadd %s183, %s189
          %s191 = smul.addr %s187, 2
          %s192 = sadd.s32 %s23, %s191
          %s193 = smul.addr %s192, 128
          %s194 = scalar_lea.hbm %s0, %s193
          %s195 = sshll.u32 %s186, 4
          %s196 = int_to_ptr.vmem [resolvable:$true] %s195
          %201 = dma.hbm_to_vmem [thread:$0]  %s194, 256, %s196, %s183, 256, 128, 8
        $region24: #{tpu_custom_call.1} parent=19 // pred_fallthru
          _
        // Predicated region
        $region25: #{tpu_custom_call.1} parent=19 // pred_check
          %p202 = pneg %p76
        $region26: #{tpu_custom_call.1} parent=19 // pred_check_branch
          %204 = sbr.rel (%p202) target = $region28
        $region27: #{tpu_custom_call.1} parent=19 // pred_region
          %p205 = scmp.lt.s32.totalorder %s23, 1
          %s206 = scalar_select %p205, %s23, 1
          %s207 = smul.addr %s206, 8
          %s208 = scalar_lea.vmem %s1, %s207
        $region28: #{tpu_custom_call.1} parent=19 // pred_fallthru
          _
        // Predicated region
        $region29: #{tpu_custom_call.1} parent=19 // pred_check
          %p209 = pneg %p102
        $region30: #{tpu_custom_call.1} parent=19 // pred_check_branch
          %211 = sbr.rel (%p209) target = $region32
        $region31: #{tpu_custom_call.1} parent=19 // pred_region
          %p212 = scmp.lt.s32.totalorder %s23, 1
          %s213 = scalar_select %p212, %s23, 1
          %s214 = smul.addr %s213, 8
          %s215 = scalar_lea.vmem %s2, %s214
        $region32: #{tpu_custom_call.1} parent=19 // pred_fallthru
          _
      $region20: #{tpu_custom_call.1} parent=5 // pred_fallthru
        _
      %p216 = scmp.le.s32.totalorder 1, %s16
      %p217 = scmp.lt.s32.totalorder %s16, 5
      %p218 = pnand %p216, %p217
      %p219 = pneg %p218
      // Predicated region
      $region33: #{tpu_custom_call.1} parent=5 // pred_check
        _
      $region34: #{tpu_custom_call.1} parent=5 // pred_check_branch
        %221 = sbr.rel (%p218) target = $region36
      $region35: #{tpu_custom_call.1} parent=5 // pred_region
        %s222 = ssub.s32 %s16, 1
        %s223 = sand.u32 %s43, 1
        %s224 = scalar_lea.sflag [#allocation3], %s223
        %s225 = sand.u32 %s43, 1
        %s226 = smul.addr %s225, 16
        %s227 = scalar_lea.vmem [#allocation2], %s226
        // Predicated region
        $region37: #{tpu_custom_call.1} parent=35 // pred_check
          %p228 = pneg %p56
        $region38: #{tpu_custom_call.1} parent=35 // pred_check_branch
          %230 = sbr.rel (%p228) target = $region40
        $region39: #{tpu_custom_call.1} parent=35 // pred_region
          %231 = dma.done %s224, 256
        $region40: #{tpu_custom_call.1} parent=35 // pred_fallthru
          _
        %s232 = sand.u32 %s43, 1
        %s233 = scalar_lea.sflag [#allocation3], %s232
        %s234 = sand.u32 %s43, 1
        %s235 = smul.addr %s234, 16
        %s236 = scalar_lea.vmem [#allocation2], %s235
        %p237 = pneg %p56
        %p238 = pneg %p53
        %p239 = scmp.lt.s32.totalorder %s25, 1
        %s240 = scalar_select %p239, %s25, 1
        %s241 = smul.addr %s240, 8
        %s242 = scalar_lea.vmem %s1, %s241
        %p243 = pneg %p82
        %p244 = pneg %p79
        %p245 = scmp.lt.s32.totalorder %s25, 1
        %s246 = scalar_select %p245, %s25, 1
        %s247 = smul.addr %s246, 8
        %s248 = scalar_lea.vmem %s2, %s247
        %p249 = pneg %p108
        %p250 = pneg %p105
        %p251 = pneg %p129
        %p252 = pneg %p126
        %p253 = pneg %p157
        %p254 = pneg %p154
        %s255 = sand.u32 %s144, 1
        %s256 = scalar_lea.sflag [#allocation4], %s255
        %s257 = sand.u32 %s144, 1
        %s258 = smul.addr %s257, 16
        %s259 = scalar_lea.vmem [#allocation5], %s258
        %s260 = smul.u32 2, %s26
        %p261 = scmp.lt.s32.totalorder %s25, 1
        %s262 = scalar_select %p261, %s25, 1
        %s263 = smul.addr %s262, 8
        %s264 = scalar_lea.vmem %s1, %s263
        %p265 = scmp.lt.s32.totalorder %s25, 1
        %s266 = scalar_select %p265, %s25, 1
        %s267 = smul.addr %s266, 8
        %s268 = scalar_lea.vmem %s2, %s267
        %s269 = smul.u32 2, %s26
        %v270 = vld [vmem:[%s227] sm:$0xff]
        %v271 = vld [vmem:[%s227 + $0x8] sm:$0xff]
        %v272 = vld [vmem:[%s264] sm:$0xff]
        %v273 = vld [vmem:[%s268] sm:$0xff]
        %v274 = vld [vmem:[%s3] sm:$0x1]
        %v275 = vmul.f32 %v270, %v272
        %v276 = vmul.f32 %v271, %v272
        %277 = vadd.xlane.f32.xlu0 %v275
        %v278 = vpop.xlane.xlu0 %277
        %279 = vadd.xlane.f32.xlu0 %v276
        %v280 = vpop.xlane.xlu0 %279
        %v281 = vadd.f32 %v278, %v273
        %v282 = vadd.f32 %v280, %v273
        %284 = vset.pattern.permute.xlu0 0
        %285 = vperm.xlu0 %284, %v281
        %v286 = vpop.permute.xlu0 %285
        %289 = vset.pattern.permute.xlu0 0
        %290 = vperm.xlu0 %289, %v282
        %v291 = vpop.permute.xlu0 %290
        %v294 = vlaneseq
        %v295 = vshrl.u32 %v294, 7
        %v296 = vsub.s32 0, %v295
        %v297 = vrot.slane %v274, %v296
        %v299 = vmul.f32 %v286, %v297
        %v300 = vmul.f32 %v291, %v297
        %v301 = vadd.f32 %v299, 1.0
        %v302 = vadd.f32 %v300, 1.0
        %vm303 = vcmp.gt.f32.partialorder %v301, 0.0
        %vm304 = vcmp.gt.f32.partialorder %v302, 0.0
        %v305 = vsel %vm303, %v270, 0.0
        %v306 = vsel %vm304, %v271, 0.0
        %307 = vst [vmem:[%s259] sm:$0xff] %v305
        %308 = vst [vmem:[%s259 + $0x8] sm:$0xff] %v306
        %s309 = sand.u32 %s144, 1
        %s310 = scalar_lea.sflag [#allocation4], %s309
        %s311 = sand.u32 %s144, 1
        %s312 = smul.addr %s311, 16
        %s313 = scalar_lea.vmem [#allocation5], %s312
        // Predicated region
        $region41: #{tpu_custom_call.1} parent=35 // pred_check
          %p314 = pneg %p154
        $region42: #{tpu_custom_call.1} parent=35 // pred_check_branch
          %316 = sbr.rel (%p314) target = $region44
        $region43: #{tpu_custom_call.1} parent=35 // pred_region
          %s317 = smul.u32 2, %s26
          %s319 = ssub.s32 256, 256
          %320 = vsyncadd %s310, %s319
          %s321 = smul.addr %s317, 2
          %s322 = sadd.s32 %s25, %s321
          %s323 = smul.addr %s322, 128
          %s324 = scalar_lea.hbm %s4, %s323
          %s325 = sshll.u32 %s313, 4
          %s326 = int_to_ptr.vmem [resolvable:$true] %s325
          %331 = dma.vmem_to_hbm [thread:$0]  %s326, 256, %s324, %s310, 128, 256, 8
        $region44: #{tpu_custom_call.1} parent=35 // pred_fallthru
          _
      $region36: #{tpu_custom_call.1} parent=5 // pred_fallthru
        _
      %p332 = scmp.le.s32.totalorder 2, %s16
      // Predicated region
      $region45: #{tpu_custom_call.1} parent=5 // pred_check
        %p333 = pneg %p332
      $region46: #{tpu_custom_call.1} parent=5 // pred_check_branch
        %335 = sbr.rel (%p333) target = $region48
      $region47: #{tpu_custom_call.1} parent=5 // pred_region
        %s336 = ssub.s32 %s16, 2
        // Predicated region
        $region49: #{tpu_custom_call.1} parent=47 // pred_check
          %p337 = pneg %p160
        $region50: #{tpu_custom_call.1} parent=47 // pred_check_branch
          %339 = sbr.rel (%p337) target = $region52
        $region51: #{tpu_custom_call.1} parent=47 // pred_region
          %s340 = sand.u32 %s145, 1
          %s341 = scalar_lea.sflag [#allocation4], %s340
          %s342 = sand.u32 %s145, 1
          %s343 = smul.addr %s342, 16
          %s344 = scalar_lea.vmem [#allocation5], %s343
          %345 = dma.done %s341, 256
        $region52: #{tpu_custom_call.1} parent=47 // pred_fallthru
          _
      $region48: #{tpu_custom_call.1} parent=5 // pred_fallthru
        _
    $region6: #{tpu_custom_call.1} parent=1 // loop_footer
      %s20 = sadd.s32 1, %s16
    $region7: #{tpu_custom_call.1} parent=1 // loop_footer_branch
      %15 = sbr.rel target = $region3
    $region8: #{tpu_custom_call.1} parent=1 // loop_exit
      _
    %346 = vsyncpa [#allocation3], 1
    %s347 = scalar_lea.sflag [#allocation3], 1
    %348 = vsyncpa %s347, 1
    %349 = vsyncpa [#allocation4], 1
    %s350 = scalar_lea.sflag [#allocation4], 1
    %351 = vsyncpa %s350, 1

</llo_original>
